<compile_context>
chip_gen: v7x
topology: tpu7x:2x2x1
jax: 0.10.0
libtpu: 0.0.40
codegen_flags: <defaults>
</compile_context>

<pallas_src>
import functools

import jax
import jax.numpy as jnp
from jax.experimental import pallas as pl
from jax.experimental.pallas import tpu as pltpu

HIDDEN = 30
HIDDEN_PAD = 128   # lane-dense hidden dim
OUT_PAD = 128      # lane-dense output dim


def _round_up(x, m):
    return ((x + m - 1) // m) * m


def mlp_kernel(x_ref, w1_ref, b1_ref, w2_ref, b2_ref, o_ref):
    # Hidden layer: x @ W1 + b1, ReLU   (W1 padded to (in, 128), b1 to (1, 128))
    h = jnp.maximum(
        jnp.dot(x_ref[...], w1_ref[...], preferred_element_type=jnp.float32)
        + b1_ref[...],
        0.0,
    )
    # Output layer: h @ W2 + b2 (raw Q-values), lane-dense (TB, 128) store.
    o_ref[...] = (
        jnp.dot(h, w2_ref[...], preferred_element_type=jnp.float32) + b2_ref[...]
    )


def prepare_params(w1, b1, w2, b2):
    """One-time glue: transpose torch-layout (out,in) weights to (in,out), make
    biases 2-D, and zero-pad hidden/output feature dims to 128 for lane-dense
    vregs/stores. Call once; reuse the result every forward step."""
    in_features = w1.shape[1]
    out_features = w2.shape[0]

    w1_p = jnp.zeros((in_features, HIDDEN_PAD), jnp.float32).at[:, :HIDDEN].set(w1.T)
    b1_p = jnp.zeros((1, HIDDEN_PAD), jnp.float32).at[0, :HIDDEN].set(b1)
    w2_p = (
        jnp.zeros((HIDDEN_PAD, OUT_PAD), jnp.float32)
        .at[:HIDDEN, :out_features]
        .set(w2.T)
    )
    b2_p = jnp.zeros((1, OUT_PAD), jnp.float32).at[0, :out_features].set(b2)
    return (w1_p, b1_p, w2_p, b2_p, out_features)


@functools.partial(jax.jit, static_argnames=("out_features",))
def _forward_padded(state, w1_p, b1_p, w2_p, b2_p, *, out_features):
    batch, in_features = state.shape

    # Batch tile: multiple of 8 (sublane), capped at 512 rows (well under the
    # v7x 32 MiB scoped-VMEM default even double-buffered).
    tb = min(512, _round_up(batch, 8))
    batch_pad = _round_up(batch, tb)
    if batch_pad != batch:
        state = jnp.pad(state, ((0, batch_pad - batch), (0, 0)))
    n_tiles = batch_pad // tb

    out = pl.pallas_call(
        mlp_kernel,
        out_shape=jax.ShapeDtypeStruct((batch_pad, OUT_PAD), jnp.float32),
        grid_spec=pltpu.PrefetchScalarGridSpec(
            num_scalar_prefetch=0,
            grid=(n_tiles,),
            in_specs=[
                pl.BlockSpec((tb, in_features), lambda i: (i, 0)),
                pl.BlockSpec((in_features, HIDDEN_PAD), lambda i: (0, 0)),
                pl.BlockSpec((1, HIDDEN_PAD), lambda i: (0, 0)),
                pl.BlockSpec((HIDDEN_PAD, OUT_PAD), lambda i: (0, 0)),
                pl.BlockSpec((1, OUT_PAD), lambda i: (0, 0)),
            ],
            out_specs=pl.BlockSpec((tb, OUT_PAD), lambda i: (i, 0)),
        ),
        compiler_params=pltpu.CompilerParams(
            dimension_semantics=("parallel",),
        ),
    )(state, w1_p, b1_p, w2_p, b2_p)

    # Restore the module's shape contract: (B, out_features).
    return out[:batch, :out_features]


def neural_network_forward(state, params):
    """state: (B, input_action_size) float32; params: output of prepare_params."""
    w1_p, b1_p, w2_p, b2_p, out_features = params
    return _forward_padded(state, w1_p, b1_p, w2_p, b2_p, out_features=out_features)


def init_params(key, input_action_size, output_action_size, hidden=HIDDEN):
    """Deterministic init matching nn.Linear's U(-1/sqrt(fan_in), 1/sqrt(fan_in)),
    returned in torch layout ((out, in) weights, (out,) biases)."""
    k1, k2, k3, k4 = jax.random.split(key, 4)
    bound1 = 1.0 / jnp.sqrt(input_action_size)
    bound2 = 1.0 / jnp.sqrt(hidden)
    w1 = jax.random.uniform(k1, (hidden, input_action_size), jnp.float32, -bound1, bound1)
    b1 = jax.random.uniform(k2, (hidden,), jnp.float32, -bound1, bound1)
    w2 = jax.random.uniform(k3, (output_action_size, hidden), jnp.float32, -bound2, bound2)
    b2 = jax.random.uniform(k4, (output_action_size,), jnp.float32, -bound2, bound2)
    return w1, b1, w2, b2


if __name__ == "__main__":
    key = jax.random.PRNGKey(0)
    input_action_size = 5   # e.g. 3 sensor signals + orientation / -orientation
    output_action_size = 3  # left / straight / right
    batch = 8

    k_state, k_params = jax.random.split(key)
    state = jax.random.normal(k_state, (batch, input_action_size), jnp.float32)
    w1, b1, w2, b2 = init_params(k_params, input_action_size, output_action_size)

    # One-time parameter preparation (transpose + pad) — not on the per-step path.
    params = prepare_params(w1, b1, w2, b2)

    q_values = neural_network_forward(state, params)
    q_values = jax.block_until_ready(q_values)

    # Reference check in plain JAX (same math as the PyTorch forward).
    ref = jnp.maximum(state @ w1.T + b1, 0.0) @ w2.T + b2
    assert q_values.shape == (batch, output_action_size)
    assert jnp.allclose(q_values, ref, atol=1e-5, rtol=1e-5)

    print("KERNEL_OK")
</pallas_src>

<mosaic_0001>
module attributes {stable_mosaic.version = 11 : i64} {
  func.func @mlp_kernel(%arg0: i32, %arg1: memref<8x5xf32, #tpu.memory_space<vmem>>, %arg2: memref<5x128xf32, #tpu.memory_space<vmem>>, %arg3: memref<1x128xf32, #tpu.memory_space<vmem>>, %arg4: memref<128x128xf32, #tpu.memory_space<vmem>>, %arg5: memref<1x128xf32, #tpu.memory_space<vmem>>, %arg6: memref<8x128xf32, #tpu.memory_space<vmem>>) attributes {dimension_semantics = [#tpu.dimension_semantics<parallel>], iteration_bounds = array<i64: 1>, scalar_prefetch = 0 : i64, scratch_operands = 0 : i64, tpu.core_type = #tpu.core_type<tc>, window_params = [{transform_indices = @transform_0, window_bounds = array<i64: 8, 5>}, {pipeline_mode = #tpu.pipeline_mode<synchronous>, transform_indices = @transform_1, window_bounds = array<i64: 5, 128>}, {pipeline_mode = #tpu.pipeline_mode<synchronous>, transform_indices = @transform_2, window_bounds = array<i64: 1, 128>}, {pipeline_mode = #tpu.pipeline_mode<synchronous>, transform_indices = @transform_3, window_bounds = array<i64: 128, 128>}, {pipeline_mode = #tpu.pipeline_mode<synchronous>, transform_indices = @transform_4, window_bounds = array<i64: 1, 128>}, {transform_indices = @transform_5, window_bounds = array<i64: 8, 128>}]} {
    %c0 = arith.constant 0 : index
    %c0_0 = arith.constant 0 : index
    %0 = vector.load %arg1[%c0, %c0_0] : memref<8x5xf32, #tpu.memory_space<vmem>>, vector<8x5xf32>
    %c0_1 = arith.constant 0 : index
    %c0_2 = arith.constant 0 : index
    %1 = vector.load %arg2[%c0_1, %c0_2] : memref<5x128xf32, #tpu.memory_space<vmem>>, vector<5x128xf32>
    %cst = arith.constant dense<0.000000e+00> : vector<8x128xf32>
    %2 = tpu.matmul %0, %1, %cst {dimension_numbers = #tpu.dot_dimension_numbers<[1], [0], [0], [1], [0, 0, 1, 1], [], []>} : vector<8x5xf32>, vector<5x128xf32>, vector<8x128xf32> -> vector<8x128xf32>
    %c0_3 = arith.constant 0 : index
    %c0_4 = arith.constant 0 : index
    %3 = vector.load %arg3[%c0_3, %c0_4] : memref<1x128xf32, #tpu.memory_space<vmem>>, vector<1x128xf32>
    %4 = vector.broadcast %3 : vector<1x128xf32> to vector<8x128xf32>
    %5 = arith.addf %2, %4 : vector<8x128xf32>
    %cst_5 = arith.constant 0.000000e+00 : f32
    %6 = vector.broadcast %cst_5 : f32 to vector<8x128xf32>
    %7 = arith.maximumf %5, %6 : vector<8x128xf32>
    %c0_6 = arith.constant 0 : index
    %c0_7 = arith.constant 0 : index
    %8 = vector.load %arg4[%c0_6, %c0_7] : memref<128x128xf32, #tpu.memory_space<vmem>>, vector<128x128xf32>
    %cst_8 = arith.constant dense<0.000000e+00> : vector<8x128xf32>
    %9 = tpu.matmul %7, %8, %cst_8 {dimension_numbers = #tpu.dot_dimension_numbers<[1], [0], [0], [1], [0, 0, 1, 1], [], []>} : vector<8x128xf32>, vector<128x128xf32>, vector<8x128xf32> -> vector<8x128xf32>
    %c0_9 = arith.constant 0 : index
    %c0_10 = arith.constant 0 : index
    %10 = vector.load %arg5[%c0_9, %c0_10] : memref<1x128xf32, #tpu.memory_space<vmem>>, vector<1x128xf32>
    %11 = vector.broadcast %10 : vector<1x128xf32> to vector<8x128xf32>
    %12 = arith.addf %9, %11 : vector<8x128xf32>
    %c0_11 = arith.constant 0 : index
    %c0_12 = arith.constant 0 : index
    %13 = vector.load %arg6[%c0_11, %c0_12] : memref<8x128xf32, #tpu.memory_space<vmem>>, vector<8x128xf32>
    tpu.vector_store %arg6[%c0_11, %c0_12], %12 {strides = array<i32>} : memref<8x128xf32, #tpu.memory_space<vmem>>, vector<8x128xf32>,
    return
  }
  func.func @transform_0(%arg0: i32) -> (i32, i32) {
    %c0_i32 = arith.constant 0 : i32
    %c0_i32_0 = arith.constant 0 : i32
    return %arg0, %c0_i32 : i32, i32
  }
  func.func @transform_1(%arg0: i32) -> (i32, i32) {
    %c0_i32 = arith.constant 0 : i32
    %c0_i32_0 = arith.constant 0 : i32
    %c0_i32_1 = arith.constant 0 : i32
    return %c0_i32, %c0_i32_0 : i32, i32
  }
  func.func @transform_2(%arg0: i32) -> (i32, i32) {
    %c0_i32 = arith.constant 0 : i32
    %c0_i32_0 = arith.constant 0 : i32
    %c0_i32_1 = arith.constant 0 : i32
    return %c0_i32, %c0_i32_0 : i32, i32
  }
  func.func @transform_3(%arg0: i32) -> (i32, i32) {
    %c0_i32 = arith.constant 0 : i32
    %c0_i32_0 = arith.constant 0 : i32
    %c0_i32_1 = arith.constant 0 : i32
    return %c0_i32, %c0_i32_0 : i32, i32
  }
  func.func @transform_4(%arg0: i32) -> (i32, i32) {
    %c0_i32 = arith.constant 0 : i32
    %c0_i32_0 = arith.constant 0 : i32
    %c0_i32_1 = arith.constant 0 : i32
    return %c0_i32, %c0_i32_0 : i32, i32
  }
  func.func @transform_5(%arg0: i32) -> (i32, i32) {
    %c0_i32 = arith.constant 0 : i32
    %c0_i32_0 = arith.constant 0 : i32
    return %arg0, %c0_i32 : i32, i32
  }
}

</mosaic_0001>

<llo_original>
// kernel: _forward_padded.1
$region0: #{_forward_padded.1}
  #allocation0 [shape = 'u32[]', space=smem, size = 0x4, offset = 0x4, fixed_abs, tag = 'smem constant byte address 0x4 - core index']
  #allocation1 [shape = 'u32[144,128]{1,0:T(1,128)}', space=vmem, size = 0x12000, scoped, tag = 'internal scratch']
  %s0 = inlined_call_operand.hbm [shape: f32[8,5], index: 0, kind: input, shape index: {}]
  %s1 = inlined_call_operand.hbm [shape: f32[5,128], index: 1, kind: input, shape index: {}]
  %s2 = inlined_call_operand.vmem [shape: f32[1,128], index: 2, kind: input, shape index: {}]
  %s3 = inlined_call_operand.hbm [shape: f32[128,128], index: 3, kind: input, shape index: {}]
  %s4 = inlined_call_operand.vmem [shape: f32[1,128], index: 4, kind: input, shape index: {}]
  %s5 = inlined_call_operand.vmem [shape: f32[8,128], index: 5, kind: output, shape index: {}]
  %s6 = sld [smem:[#allocation0]]
  $region42: #{_forward_padded.1} parent=0
    _
  %s8 = ssub.s32 1, %s6
  %s9 = scalar_select 0, %s8, %s6
  $region1: #{_forward_padded.1} parent=0
    #allocation2 [shape = 'u8[4096]{0}', space=vmem, size = 0x1000, scoped, tag = 'input window, operand 0, single buffered']
    #allocation3 [shape = 's32[1]{0}', space=sflag, size = 0x4, scoped, tag = 'scoped memory for _forward_padded.1']
    #allocation4 [shape = 'u8[4096]{0}', space=vmem, size = 0x1000, scoped, tag = 'input window, operand 1, single buffered']
    #allocation5 [shape = 's32[1]{0}', space=sflag, size = 0x4, scoped, tag = 'scoped memory for _forward_padded.1']
    #allocation6 [shape = 'u8[65536]{0}', space=vmem, size = 0x10000, scoped, tag = 'input window, operand 3, single buffered']
    %10 = vsyncpa [#allocation3], 0
    %11 = vsyncpa [#allocation5], 0
    // Predicated region
    $region2: #{_forward_padded.1} parent=1 // pred_check
      _
    $region3: #{_forward_padded.1} parent=1 // pred_check_branch
      %13 = sbr.rel (0) target = $region5
    $region4: #{_forward_padded.1} parent=1 // pred_region
      %s15 = ssub.s32 128, 128
      %16 = vsyncadd [#allocation3], %s15
      %s18 = sshll.u32 [#allocation2], 4
      %s19 = int_to_ptr.vmem [resolvable:$true] %s18
      %21 = dma.hbm_to_vmem [thread:$0]  %s0, 128, %s19, [#allocation3]
    $region5: #{_forward_padded.1} parent=1 // pred_fallthru
      _
    // Predicated region
    $region6: #{_forward_padded.1} parent=1 // pred_check
      _
    $region7: #{_forward_padded.1} parent=1 // pred_check_branch
      %23 = sbr.rel (0) target = $region9
    $region8: #{_forward_padded.1} parent=1 // pred_region
      %s25 = ssub.s32 128, 128
      %26 = vsyncadd [#allocation5], %s25
      %s28 = sshll.u32 [#allocation4], 4
      %s29 = int_to_ptr.vmem [resolvable:$true] %s28
      %31 = dma.hbm_to_vmem [thread:$0]  %s1, 128, %s29, [#allocation5]
    $region9: #{_forward_padded.1} parent=1 // pred_fallthru
      _
    // Predicated region
    $region10: #{_forward_padded.1} parent=1 // pred_check
      _
    $region11: #{_forward_padded.1} parent=1 // pred_check_branch
      %33 = sbr.rel (0) target = $region13
    $region12: #{_forward_padded.1} parent=1 // pred_region
      _
    $region13: #{_forward_padded.1} parent=1 // pred_fallthru
      _
    // Predicated region
    $region14: #{_forward_padded.1} parent=1 // pred_check
      _
    $region15: #{_forward_padded.1} parent=1 // pred_check_branch
      %35 = sbr.rel (0) target = $region17
    $region16: #{_forward_padded.1} parent=1 // pred_region
      %s37 = ssub.s32 2048, 2048
      %38 = vsyncadd [#allocation5], %s37
      %s39 = sshll.u32 [#allocation6], 4
      %s40 = int_to_ptr.vmem [resolvable:$true] %s39
      %45 = dma.hbm_to_vmem [thread:$0]  %s3, 2048, %s40, [#allocation5], 128, 128, 8
    $region17: #{_forward_padded.1} parent=1 // pred_fallthru
      _
    // Predicated region
    $region18: #{_forward_padded.1} parent=1 // pred_check
      _
    $region19: #{_forward_padded.1} parent=1 // pred_check_branch
      %47 = sbr.rel (0) target = $region21
    $region20: #{_forward_padded.1} parent=1 // pred_region
      _
    $region21: #{_forward_padded.1} parent=1 // pred_fallthru
      _
    // Predicated region
    $region22: #{_forward_padded.1} parent=1 // pred_check
      _
    $region23: #{_forward_padded.1} parent=1 // pred_check_branch
      %49 = sbr.rel (0) target = $region25
    $region24: #{_forward_padded.1} parent=1 // pred_region
      %50 = dma.done [#allocation3], 128
    $region25: #{_forward_padded.1} parent=1 // pred_fallthru
      _
    // Predicated region
    $region26: #{_forward_padded.1} parent=1 // pred_check
      _
    $region27: #{_forward_padded.1} parent=1 // pred_check_branch
      %52 = sbr.rel (0) target = $region29
    $region28: #{_forward_padded.1} parent=1 // pred_region
      %53 = dma.done [#allocation5], 128
    $region29: #{_forward_padded.1} parent=1 // pred_fallthru
      _
    // Predicated region
    $region30: #{_forward_padded.1} parent=1 // pred_check
      _
    $region31: #{_forward_padded.1} parent=1 // pred_check_branch
      %55 = sbr.rel (0) target = $region33
    $region32: #{_forward_padded.1} parent=1 // pred_region
      %56 = dma.done [#allocation5], 2048
    $region33: #{_forward_padded.1} parent=1 // pred_fallthru
      _
    %v57 = vld [vmem:[#allocation2] sm:$0xff]
    %v58 = vld [vmem:[#allocation4] sm:$0x1f]
    %v59 = vld [vmem:[%s2] sm:$0x1]
    %v61 = vlaneseq
    %v62 = vshrl.u32 %v61, 7
    %v63 = vsub.s32 0, %v62
    %v64 = vrot.slane %v59, %v63
    %vm66 = vcmask 39936
    %v68 = vsel %vm66, %v57, 0
    %vm70 = vcmask 1044480
    %v72 = vsel %vm70, %v58, 0
    %74 = vmatprep.subr.mxu0 0.0
    %75 = vmatpush1.msra.mxu0 %v72
    %76 = vmatprep.subr.mxu0 0.0
    %77 = vmatpush1.msra.mxu0 0.0
    %78 = vmatprep.subr.mxu0 0.0
    %79 = vmatpush1.msra.mxu0 0.0
    %80 = vmatprep.subr.mxu0 0.0
    %81 = vmatpush1.msra.mxu0 0.0
    %82 = vmatprep.subr.mxu0 0.0
    %83 = vmatpush1.msra.mxu0 0.0
    %84 = vmatprep.subr.mxu0 0.0
    %85 = vmatpush1.msra.mxu0 0.0
    %86 = vmatprep.subr.mxu0 0.0
    %87 = vmatpush1.msra.mxu0 0.0
    %88 = vmatprep.subr.mxu0 0.0
    %89 = vmatpush1.msra.mxu0 0.0
    %90 = vmatprep.subr.mxu0 0.0
    %91 = vmatpush1.msra.mxu0 0.0
    %92 = vmatprep.subr.mxu0 0.0
    %93 = vmatpush1.msra.mxu0 0.0
    %94 = vmatprep.subr.mxu0 0.0
    %95 = vmatpush1.msra.mxu0 0.0
    %96 = vmatprep.subr.mxu0 0.0
    %97 = vmatpush1.msra.mxu0 0.0
    %98 = vmatprep.subr.mxu0 0.0
    %99 = vmatpush1.msra.mxu0 0.0
    %100 = vmatprep.subr.mxu0 0.0
    %101 = vmatpush1.msra.mxu0 0.0
    %102 = vmatprep.subr.mxu0 0.0
    %103 = vmatpush1.msra.mxu0 0.0
    %104 = vmatprep.subr.mxu0 0.0
    %105 = vmatpush1.msra.mxu0 0.0
    %106 = vmatprep.subr.mxu0 0.0
    %107 = vmatpush1.msra.mxu0 0.0
    %108 = vmatprep.subr.mxu0 0.0
    %109 = vmatpush1.msra.mxu0 0.0
    %110 = vmatprep.subr.mxu0 0.0
    %111 = vmatpush1.msra.mxu0 0.0
    %112 = vmatprep.subr.mxu0 0.0
    %113 = vmatpush1.msra.mxu0 0.0
    %114 = vmatprep.subr.mxu0 0.0
    %115 = vmatpush1.msra.mxu0 0.0
    %116 = vmatprep.subr.mxu0 0.0
    %117 = vmatpush1.msra.mxu0 0.0
    %118 = vmatprep.subr.mxu0 0.0
    %119 = vmatpush1.msra.mxu0 0.0
    %120 = vmatprep.subr.mxu0 0.0
    %121 = vmatpush1.msra.mxu0 0.0
    %122 = vmatprep.subr.mxu0 0.0
    %123 = vmatpush1.msra.mxu0 0.0
    %124 = vmatprep.subr.mxu0 0.0
    %125 = vmatpush1.msra.mxu0 0.0
    %126 = vmatprep.subr.mxu0 0.0
    %127 = vmatpush1.msra.mxu0 0.0
    %128 = vmatprep.subr.mxu0 0.0
    %129 = vmatpush1.msra.mxu0 0.0
    %130 = vmatprep.subr.mxu0 0.0
    %131 = vmatpush1.msra.mxu0 0.0
    %132 = vmatprep.subr.mxu0 0.0
    %133 = vmatpush1.msra.mxu0 0.0
    %134 = vmatprep.subr.mxu0 0.0
    %135 = vmatpush1.msra.mxu0 0.0
    %136 = vmatprep.subr.mxu0 0.0
    %137 = vmatpush1.msra.mxu0 0.0
    %138 = vmatprep.mubr.f32.mxu0 0.0
    %139 = vmatmul.mubr.f32.gmra.mrb[0].mxu0 %v68
    %v140 = vpop.f32.mrb[0].mxu0
    %v141 = vadd.f32 %v64, %v140
    %v142 = vpop.f32.mrb[0].mxu0
    %143 = vdwg.mxu0
    %v144 = vmax.f32 %v141, 0.0
    %v145 = vld [vmem:[#allocation6] sm:$0xff]
    %v146 = vld [vmem:[#allocation6 + $0x8] sm:$0xff]
    %v147 = vld [vmem:[#allocation6 + $0x10] sm:$0xff]
    %v148 = vld [vmem:[#allocation6 + $0x18] sm:$0xff]
    %v149 = vld [vmem:[#allocation6 + $0x20] sm:$0xff]
    %v150 = vld [vmem:[#allocation6 + $0x28] sm:$0xff]
    %v151 = vld [vmem:[#allocation6 + $0x30] sm:$0xff]
    %v152 = vld [vmem:[#allocation6 + $0x38] sm:$0xff]
    %v153 = vld [vmem:[#allocation6 + $0x40] sm:$0xff]
    %v154 = vld [vmem:[#allocation6 + $0x48] sm:$0xff]
    %v155 = vld [vmem:[#allocation6 + $0x50] sm:$0xff]
    %v156 = vld [vmem:[#allocation6 + $0x58] sm:$0xff]
    %v157 = vld [vmem:[#allocation6 + $0x60] sm:$0xff]
    %v158 = vld [vmem:[#allocation6 + $0x68] sm:$0xff]
    %v159 = vld [vmem:[#allocation6 + $0x70] sm:$0xff]
    %v160 = vld [vmem:[#allocation6 + $0x78] sm:$0xff]
    %v161 = vld [vmem:[%s4] sm:$0x1]
    %v163 = vlaneseq
    %v164 = vshrl.u32 %v163, 7
    %v165 = vsub.s32 0, %v164
    %v166 = vrot.slane %v161, %v165
    %168 = vmatprep.subr.mxu0 0.0
    %169 = vmatpush1.msra.mxu0 %v145
    %170 = vmatprep.subr.mxu0 0.0
    %171 = vmatpush1.msra.mxu0 %v146
    %172 = vmatprep.subr.mxu0 0.0
    %173 = vmatpush1.msra.mxu0 %v147
    %174 = vmatprep.subr.mxu0 0.0
    %175 = vmatpush1.msra.mxu0 %v148
    %176 = vmatprep.subr.mxu0 0.0
    %177 = vmatpush1.msra.mxu0 %v149
    %178 = vmatprep.subr.mxu0 0.0
    %179 = vmatpush1.msra.mxu0 %v150
    %180 = vmatprep.subr.mxu0 0.0
    %181 = vmatpush1.msra.mxu0 %v151
    %182 = vmatprep.subr.mxu0 0.0
    %183 = vmatpush1.msra.mxu0 %v152
    %184 = vmatprep.subr.mxu0 0.0
    %185 = vmatpush1.msra.mxu0 %v153
    %186 = vmatprep.subr.mxu0 0.0
    %187 = vmatpush1.msra.mxu0 %v154
    %188 = vmatprep.subr.mxu0 0.0
    %189 = vmatpush1.msra.mxu0 %v155
    %190 = vmatprep.subr.mxu0 0.0
    %191 = vmatpush1.msra.mxu0 %v156
    %192 = vmatprep.subr.mxu0 0.0
    %193 = vmatpush1.msra.mxu0 %v157
    %194 = vmatprep.subr.mxu0 0.0
    %195 = vmatpush1.msra.mxu0 %v158
    %196 = vmatprep.subr.mxu0 0.0
    %197 = vmatpush1.msra.mxu0 %v159
    %198 = vmatprep.subr.mxu0 0.0
    %199 = vmatpush1.msra.mxu0 %v160
    %200 = vmatprep.subr.mxu0 0.0
    %201 = vmatpush1.msra.mxu0 0.0
    %202 = vmatprep.subr.mxu0 0.0
    %203 = vmatpush1.msra.mxu0 0.0
    %204 = vmatprep.subr.mxu0 0.0
    %205 = vmatpush1.msra.mxu0 0.0
    %206 = vmatprep.subr.mxu0 0.0
    %207 = vmatpush1.msra.mxu0 0.0
    %208 = vmatprep.subr.mxu0 0.0
    %209 = vmatpush1.msra.mxu0 0.0
    %210 = vmatprep.subr.mxu0 0.0
    %211 = vmatpush1.msra.mxu0 0.0
    %212 = vmatprep.subr.mxu0 0.0
    %213 = vmatpush1.msra.mxu0 0.0
    %214 = vmatprep.subr.mxu0 0.0
    %215 = vmatpush1.msra.mxu0 0.0
    %216 = vmatprep.subr.mxu0 0.0
    %217 = vmatpush1.msra.mxu0 0.0
    %218 = vmatprep.subr.mxu0 0.0
    %219 = vmatpush1.msra.mxu0 0.0
    %220 = vmatprep.subr.mxu0 0.0
    %221 = vmatpush1.msra.mxu0 0.0
    %222 = vmatprep.subr.mxu0 0.0
    %223 = vmatpush1.msra.mxu0 0.0
    %224 = vmatprep.subr.mxu0 0.0
    %225 = vmatpush1.msra.mxu0 0.0
    %226 = vmatprep.subr.mxu0 0.0
    %227 = vmatpush1.msra.mxu0 0.0
    %228 = vmatprep.subr.mxu0 0.0
    %229 = vmatpush1.msra.mxu0 0.0
    %230 = vmatprep.subr.mxu0 0.0
    %231 = vmatpush1.msra.mxu0 0.0
    %232 = vmatprep.mubr.f32.mxu0 0.0
    %233 = vmatmul.mubr.f32.gmra.mrb[0].mxu0 %v144
    %v234 = vpop.f32.mrb[0].mxu0
    %v235 = vadd.f32 %v166, %v234
    %v236 = vpop.f32.mrb[0].mxu0
    %237 = vdwg.mxu0
    %238 = vst [vmem:[%s5] sm:$0xff] %v235
    // Predicated region
    $region34: #{_forward_padded.1} parent=1 // pred_check
      _
    $region35: #{_forward_padded.1} parent=1 // pred_check_branch
      %240 = sbr.rel (0) target = $region37
    $region36: #{_forward_padded.1} parent=1 // pred_region
      _
    $region37: #{_forward_padded.1} parent=1 // pred_fallthru
      _
    // Predicated region
    $region38: #{_forward_padded.1} parent=1 // pred_check
      _
    $region39: #{_forward_padded.1} parent=1 // pred_check_branch
      %242 = sbr.rel (0) target = $region41
    $region40: #{_forward_padded.1} parent=1 // pred_region
      _
    $region41: #{_forward_padded.1} parent=1 // pred_fallthru
      _
    %243 = vsyncpa [#allocation3], 1
    %244 = vsyncpa [#allocation5], 1

</llo_original>
